<compile_context>
chip_gen: v6e
topology: v6e:2x2x1
jax: 0.10.0
libtpu: 0.0.40
codegen_flags: <defaults>
</compile_context>

<pallas_src>
import functools

import jax
import jax.numpy as jnp
from jax import lax
from jax.experimental import pallas as pl
from jax.experimental.pallas import tpu as pltpu

_HIDDEN = 64     # hidden width of both MLPs (fixed by the module)
_OUT_PAD = 128   # lane-dense padded output width


def _encoder_kernel(data_ref, wa_ref, wb_ref, bias_ref, out_ref, acc_ref,
                    *, n_rows, tile_n, d_in, g_dim):
    i = pl.program_id(0)

    @pl.when(i == 0)
    def _init():
        acc_ref[...] = jnp.zeros_like(acc_ref)

    # ---- net_f first layer on this tile of rows ---------------------------
    x = data_ref[...].astype(jnp.float32)                         # [tile_n, d_in]
    w1 = wa_ref[:d_in, :]                                         # [d_in, 64]
    b1 = bias_ref[0:1, :_HIDDEN]                                  # [1, 64]
    h1 = jnp.dot(x, w1, preferred_element_type=jnp.float32) + b1
    h1 = jnp.maximum(h1, 0.0)                                     # [tile_n, 64]

    # Mask rows past the true N (the padded tail of the last tile holds
    # undefined data and relu(b1) != 0, so masking is required).
    if n_rows % tile_n != 0:
        row = lax.broadcasted_iota(jnp.int32, (tile_n, 1), 0) + i * tile_n
        h1 = jnp.where(row < n_rows, h1, 0.0)

    # Row-sum hoisted above the second (affine) layer.
    acc_ref[...] += jnp.sum(h1, axis=0, keepdims=True)            # [1, 64]

    # ---- finalize: net_f second layer + net_q, only on the last step ------
    @pl.when(i == pl.num_programs(0) - 1)
    def _final():
        h1_sum = acc_ref[...]                                     # [1, 64]
        w2 = wb_ref[:, _OUT_PAD:_OUT_PAD + g_dim]                 # [64, g_dim]
        b2 = bias_ref[1:2, :g_dim]                                # [1, g_dim]
        # sum_n(h1_n @ w2 + b2) == (sum_n h1_n) @ w2 + N * b2
        g_sum = (jnp.dot(h1_sum, w2, preferred_element_type=jnp.float32)
                 + float(n_rows) * b2)                            # [1, g_dim]

        w3 = wa_ref[d_in:, :]                                     # [g_dim, 64]
        b3 = bias_ref[2:3, :_HIDDEN]                              # [1, 64]
        h2 = jnp.maximum(
            jnp.dot(g_sum, w3, preferred_element_type=jnp.float32) + b3, 0.0)

        w4 = wb_ref[:, :_OUT_PAD]                                 # [64, 128] zero-padded
        b4 = bias_ref[3:4, :]                                     # [1, 128] zero-padded
        out = jnp.dot(h2, w4, preferred_element_type=jnp.float32) + b4
        out_ref[...] = out.astype(out_ref.dtype)                  # [1, 128] lane-dense


def init_encoder_params(key, s_dim, a_dim, z_dim, g_dim, dtype=jnp.float32):
    """Deterministic synthetic parameters (PyTorch-Linear shapes, pre-transposed)."""
    d_in = 2 * s_dim + a_dim
    hidden = _HIDDEN
    d_out = 2 * z_dim
    keys = jax.random.split(key, 8)

    def lin(kw, kb, fan_in, fan_out):
        bound = 1.0 / jnp.sqrt(fan_in)
        w = jax.random.uniform(kw, (fan_in, fan_out), dtype, -bound, bound)
        b = jax.random.uniform(kb, (1, fan_out), dtype, -bound, bound)
        return w, b

    w1, b1 = lin(keys[0], keys[1], d_in, hidden)      # net_f[0]
    w2, b2 = lin(keys[2], keys[3], hidden, g_dim)     # net_f[2]
    w3, b3 = lin(keys[4], keys[5], g_dim, hidden)     # net_q[0]
    w4, b4 = lin(keys[6], keys[7], hidden, d_out)     # net_q[2]
    return (w1, b1, w2, b2, w3, b3, w4, b4)


def pack_encoder_params(params, g_dim, d_out):
    """Pack the 8 Linear tensors into 3 VMEM-friendly slabs (do this once)."""
    (w1, b1, w2, b2, w3, b3, w4, b4) = params
    hidden = _HIDDEN
    # Slab A: w1 and w3 stacked along rows (both have 64 output columns).
    wa = jnp.concatenate([w1, w3], axis=0).astype(jnp.float32)        # [d_in+g_dim, 64]
    # Slab B: lane-padded w4 first (aligned [:,:128] slice), then w2.
    w4p = jnp.zeros((hidden, _OUT_PAD), jnp.float32).at[:, :d_out].set(w4)
    wb = jnp.concatenate([w4p, w2.astype(jnp.float32)], axis=1)       # [64, 128+g_dim]
    # Bias slab: 4 rows x 128 lanes, zero padded.
    bias = jnp.zeros((4, _OUT_PAD), jnp.float32)
    bias = bias.at[0, :hidden].set(b1.reshape(-1))
    bias = bias.at[1, :g_dim].set(b2.reshape(-1))
    bias = bias.at[2, :hidden].set(b3.reshape(-1))
    bias = bias.at[3, :d_out].set(b4.reshape(-1))
    return wa, wb, bias


def encoder_forward(data_m, params, *, tile_n=512):
    """data_m: [N, 2*s_dim + a_dim]; returns flat [2*z_dim] f32 vector."""
    (w1, _b1, w2, _b2, _w3, _b3, w4, _b4) = params
    n_rows, d_in = data_m.shape
    g_dim = w2.shape[1]
    d_out = w4.shape[1]
    assert w1.shape == (d_in, _HIDDEN)

    wa, wb, bias = pack_encoder_params(params, g_dim, d_out)

    # Row tile: multiple of 8 sublanes, capped for tiny N; modest blocks keep
    # double-buffered VMEM use small even on v7x (64 MiB physical).
    tile_n = int(min(tile_n, max(8, ((n_rows + 7) // 8) * 8)))
    tile_n = ((tile_n + 7) // 8) * 8
    grid = (pl.cdiv(n_rows, tile_n),)

    kernel = functools.partial(_encoder_kernel, n_rows=n_rows, tile_n=tile_n,
                               d_in=d_in, g_dim=g_dim)

    out = pl.pallas_call(
        kernel,
        out_shape=jax.ShapeDtypeStruct((1, _OUT_PAD), jnp.float32),
        grid_spec=pltpu.PrefetchScalarGridSpec(
            num_scalar_prefetch=0,
            grid=grid,
            in_specs=[
                pl.BlockSpec((tile_n, d_in), lambda i: (i, 0)),   # streamed rows
                pl.BlockSpec(wa.shape, lambda i: (0, 0)),         # resident weights
                pl.BlockSpec(wb.shape, lambda i: (0, 0)),
                pl.BlockSpec(bias.shape, lambda i: (0, 0)),
            ],
            out_specs=pl.BlockSpec((1, _OUT_PAD), lambda i: (0, 0)),
            scratch_shapes=[pltpu.VMEM((1, _HIDDEN), jnp.float32)],
        ),
        compiler_params=pltpu.CompilerParams(
            dimension_semantics=("arbitrary",)),
    )(data_m, wa, wb, bias)

    return out[0, :d_out]   # drop lane padding -> flat [2*z_dim]


def encoder_forward_ref(data_m, params):
    """Pure-JAX reference for correctness checking."""
    (w1, b1, w2, b2, w3, b3, w4, b4) = params
    h1 = jnp.maximum(data_m @ w1 + b1, 0.0)
    g = h1 @ w2 + b2
    g_sum = jnp.sum(g, axis=0, keepdims=True)
    h2 = jnp.maximum(g_sum @ w3 + b3, 0.0)
    return (h2 @ w4 + b4).reshape(-1)


if __name__ == "__main__":
    # Small shapes consistent with the module's forward.
    s_dim, a_dim, z_dim, g_dim = 6, 4, 8, 16
    N = 20                                 # rows in data_m (exercises a masked tail)
    d_in = 2 * s_dim + a_dim               # 16

    key = jax.random.PRNGKey(0)
    k_data, k_param = jax.random.split(key)
    data_m = jax.random.normal(k_data, (N, d_in), dtype=jnp.float32)
    params = init_encoder_params(k_param, s_dim, a_dim, z_dim, g_dim)

    # tile_n=8 -> 3 grid steps: exercises init / accumulate / masked-tail / finalize.
    out = encoder_forward(data_m, params, tile_n=8)
    out = jax.block_until_ready(out)

    ref = encoder_forward_ref(data_m, params)
    assert out.shape == (2 * z_dim,), out.shape
    assert jnp.allclose(out, ref, atol=1e-4, rtol=1e-4), (out, ref)

    print("KERNEL_OK")
</pallas_src>

<mosaic_0001>
module attributes {stable_mosaic.version = 11 : i64} {
  func.func @_encoder_kernel(%arg0: i32, %arg1: memref<8x16xf32, #tpu.memory_space<vmem>>, %arg2: memref<32x64xf32, #tpu.memory_space<vmem>>, %arg3: memref<64x144xf32, #tpu.memory_space<vmem>>, %arg4: memref<4x128xf32, #tpu.memory_space<vmem>>, %arg5: memref<1x128xf32, #tpu.memory_space<vmem>>, %arg6: memref<1x64xf32, #tpu.memory_space<vmem>>) attributes {dimension_semantics = [#tpu.dimension_semantics<arbitrary>], iteration_bounds = array<i64: 3>, scalar_prefetch = 0 : i64, scratch_operands = 1 : i64, tpu.core_type = #tpu.core_type<tc>, window_params = [{transform_indices = @transform_0, window_bounds = array<i64: 8, 16>}, {pipeline_mode = #tpu.pipeline_mode<synchronous>, transform_indices = @transform_1, window_bounds = array<i64: 32, 64>}, {pipeline_mode = #tpu.pipeline_mode<synchronous>, transform_indices = @transform_2, window_bounds = array<i64: 64, 144>}, {pipeline_mode = #tpu.pipeline_mode<synchronous>, transform_indices = @transform_3, window_bounds = array<i64: 4, 128>}, {pipeline_mode = #tpu.pipeline_mode<synchronous>, transform_indices = @transform_4, window_bounds = array<i64: 1, 128>}]} {
    %c0_i32 = arith.constant 0 : i32
    %0 = arith.cmpi eq, %arg0, %c0_i32 : i32
    %1 = arith.extui %0 : i1 to i32
    %c0_i32_0 = arith.constant 0 : i32
    %2 = arith.cmpi ne, %1, %c0_i32_0 : i32
    scf.if %2 {
      %cst_14 = arith.constant 0.000000e+00 : f32
      %29 = vector.broadcast %cst_14 : f32 to vector<1x64xf32>
      %c0_15 = arith.constant 0 : index
      %c0_16 = arith.constant 0 : index
      %30 = vector.load %arg6[%c0_15, %c0_16] : memref<1x64xf32, #tpu.memory_space<vmem>>, vector<1x64xf32>
      tpu.vector_store %arg6[%c0_15, %c0_16], %29 {strides = array<i32>} : memref<1x64xf32, #tpu.memory_space<vmem>>, vector<1x64xf32>,
    } else {
    }
    %c0 = arith.constant 0 : index
    %c0_1 = arith.constant 0 : index
    %3 = vector.load %arg1[%c0, %c0_1] : memref<8x16xf32, #tpu.memory_space<vmem>>, vector<8x16xf32>
    %c0_2 = arith.constant 0 : index
    %c0_3 = arith.constant 0 : index
    %4 = vector.load %arg2[%c0_2, %c0_3] : memref<32x64xf32, #tpu.memory_space<vmem>>, vector<16x64xf32>
    %c0_4 = arith.constant 0 : index
    %c0_5 = arith.constant 0 : index
    %5 = vector.load %arg4[%c0_4, %c0_5] : memref<4x128xf32, #tpu.memory_space<vmem>>, vector<1x64xf32>
    %cst = arith.constant dense<0.000000e+00> : vector<8x64xf32>
    %6 = tpu.matmul %3, %4, %cst {dimension_numbers = #tpu.dot_dimension_numbers<[1], [0], [0], [1], [0, 0, 1, 1], [], []>} : vector<8x16xf32>, vector<16x64xf32>, vector<8x64xf32> -> vector<8x64xf32>
    %7 = vector.broadcast %5 : vector<1x64xf32> to vector<8x64xf32>
    %8 = arith.addf %6, %7 : vector<8x64xf32>
    %cst_6 = arith.constant 0.000000e+00 : f32
    %9 = vector.broadcast %cst_6 : f32 to vector<8x64xf32>
    %10 = arith.maximumf %8, %9 : vector<8x64xf32>
    %11 = tpu.iota {dimensions = array<i32: 0>} : vector<8x1xi32>
    %c8_i32 = arith.constant 8 : i32
    %12 = arith.muli %arg0, %c8_i32 : i32
    %13 = vector.broadcast %12 : i32 to vector<8x1xi32>
    %14 = arith.addi %11, %13 : vector<8x1xi32>
    %c20_i32 = arith.constant 20 : i32
    %15 = vector.broadcast %c20_i32 : i32 to vector<8x1xi32>
    %16 = arith.cmpi slt, %14, %15 : vector<8x1xi32>
    %cst_7 = arith.constant 0.000000e+00 : f32
    %17 = vector.shape_cast %16 : vector<8x1xi1> to vector<8x1xi1>
    %18 = vector.broadcast %17 : vector<8x1xi1> to vector<8x64xi1>
    %19 = vector.broadcast %cst_7 : f32 to vector<8x64xf32>
    %20 = arith.select %18, %10, %19 : vector<8x64xi1>, vector<8x64xf32>
    %c0_8 = arith.constant 0 : index
    %c0_9 = arith.constant 0 : index
    %21 = vector.load %arg6[%c0_8, %c0_9] : memref<1x64xf32, #tpu.memory_space<vmem>>, vector<1x64xf32>
    %cst_10 = arith.constant dense<0.000000e+00> : vector<64xf32>
    %22 = vector.multi_reduction <add>, %20, %cst_10 [0] : vector<8x64xf32> to vector<64xf32>
    %23 = vector.shape_cast %22 : vector<64xf32> to vector<1x64xf32>
    %24 = arith.addf %21, %23 : vector<1x64xf32>
    %c0_11 = arith.constant 0 : index
    %c0_12 = arith.constant 0 : index
    %25 = vector.load %arg6[%c0_11, %c0_12] : memref<1x64xf32, #tpu.memory_space<vmem>>, vector<1x64xf32>
    tpu.vector_store %arg6[%c0_11, %c0_12], %24 {strides = array<i32>} : memref<1x64xf32, #tpu.memory_space<vmem>>, vector<1x64xf32>,
    %c2_i32 = arith.constant 2 : i32
    %26 = arith.cmpi eq, %arg0, %c2_i32 : i32
    %27 = arith.extui %26 : i1 to i32
    %c0_i32_13 = arith.constant 0 : i32
    %28 = arith.cmpi ne, %27, %c0_i32_13 : i32
    scf.if %28 {
      %c0_14 = arith.constant 0 : index
      %c0_15 = arith.constant 0 : index
      %29 = vector.load %arg6[%c0_14, %c0_15] : memref<1x64xf32, #tpu.memory_space<vmem>>, vector<1x64xf32>
      %c0_16 = arith.constant 0 : index
      %c128 = arith.constant 128 : index
      %30 = vector.load %arg3[%c0_16, %c128] : memref<64x144xf32, #tpu.memory_space<vmem>>, vector<64x16xf32>
      %c1 = arith.constant 1 : index
      %c0_17 = arith.constant 0 : index
      %31 = vector.load %arg4[%c1, %c0_17] : memref<4x128xf32, #tpu.memory_space<vmem>>, vector<1x16xf32>
      %cst_18 = arith.constant dense<0.000000e+00> : vector<1x16xf32>
      %32 = tpu.matmul %29, %30, %cst_18 {dimension_numbers = #tpu.dot_dimension_numbers<[1], [0], [0], [1], [0, 0, 1, 1], [], []>} : vector<1x64xf32>, vector<64x16xf32>, vector<1x16xf32> -> vector<1x16xf32>
      %cst_19 = arith.constant 2.000000e+01 : f32
      %33 = vector.broadcast %cst_19 : f32 to vector<1x16xf32>
      %34 = arith.mulf %33, %31 : vector<1x16xf32>
      %35 = arith.addf %32, %34 : vector<1x16xf32>
      %c16 = arith.constant 16 : index
      %c0_20 = arith.constant 0 : index
      %36 = vector.load %arg2[%c16, %c0_20] : memref<32x64xf32, #tpu.memory_space<vmem>>, vector<16x64xf32>
      %c2 = arith.constant 2 : index
      %c0_21 = arith.constant 0 : index
      %37 = vector.load %arg4[%c2, %c0_21] : memref<4x128xf32, #tpu.memory_space<vmem>>, vector<1x64xf32>
      %cst_22 = arith.constant dense<0.000000e+00> : vector<1x64xf32>
      %38 = tpu.matmul %35, %36, %cst_22 {dimension_numbers = #tpu.dot_dimension_numbers<[1], [0], [0], [1], [0, 0, 1, 1], [], []>} : vector<1x16xf32>, vector<16x64xf32>, vector<1x64xf32> -> vector<1x64xf32>
      %39 = arith.addf %38, %37 : vector<1x64xf32>
      %cst_23 = arith.constant 0.000000e+00 : f32
      %40 = vector.broadcast %cst_23 : f32 to vector<1x64xf32>
      %41 = arith.maximumf %39, %40 : vector<1x64xf32>
      %c0_24 = arith.constant 0 : index
      %c0_25 = arith.constant 0 : index
      %42 = vector.load %arg3[%c0_24, %c0_25] : memref<64x144xf32, #tpu.memory_space<vmem>>, vector<64x128xf32>
      %c3 = arith.constant 3 : index
      %c0_26 = arith.constant 0 : index
      %43 = vector.load %arg4[%c3, %c0_26] : memref<4x128xf32, #tpu.memory_space<vmem>>, vector<1x128xf32>
      %cst_27 = arith.constant dense<0.000000e+00> : vector<1x128xf32>
      %44 = tpu.matmul %41, %42, %cst_27 {dimension_numbers = #tpu.dot_dimension_numbers<[1], [0], [0], [1], [0, 0, 1, 1], [], []>} : vector<1x64xf32>, vector<64x128xf32>, vector<1x128xf32> -> vector<1x128xf32>
      %45 = arith.addf %44, %43 : vector<1x128xf32>
      %c0_28 = arith.constant 0 : index
      %c0_29 = arith.constant 0 : index
      %46 = vector.load %arg5[%c0_28, %c0_29] : memref<1x128xf32, #tpu.memory_space<vmem>>, vector<1x128xf32>
      tpu.vector_store %arg5[%c0_28, %c0_29], %45 {strides = array<i32>} : memref<1x128xf32, #tpu.memory_space<vmem>>, vector<1x128xf32>,
    } else {
    }
    return
  }
  func.func @transform_0(%arg0: i32) -> (i32, i32) {
    %c0_i32 = arith.constant 0 : i32
    %c0_i32_0 = arith.constant 0 : i32
    return %arg0, %c0_i32 : i32, i32
  }
  func.func @transform_1(%arg0: i32) -> (i32, i32) {
    %c0_i32 = arith.constant 0 : i32
    %c0_i32_0 = arith.constant 0 : i32
    %c0_i32_1 = arith.constant 0 : i32
    return %c0_i32, %c0_i32_0 : i32, i32
  }
  func.func @transform_2(%arg0: i32) -> (i32, i32) {
    %c0_i32 = arith.constant 0 : i32
    %c0_i32_0 = arith.constant 0 : i32
    %c0_i32_1 = arith.constant 0 : i32
    return %c0_i32, %c0_i32_0 : i32, i32
  }
  func.func @transform_3(%arg0: i32) -> (i32, i32) {
    %c0_i32 = arith.constant 0 : i32
    %c0_i32_0 = arith.constant 0 : i32
    %c0_i32_1 = arith.constant 0 : i32
    return %c0_i32, %c0_i32_0 : i32, i32
  }
  func.func @transform_4(%arg0: i32) -> (i32, i32) {
    %c0_i32 = arith.constant 0 : i32
    %c0_i32_0 = arith.constant 0 : i32
    %c0_i32_1 = arith.constant 0 : i32
    return %c0_i32, %c0_i32_0 : i32, i32
  }
}

</mosaic_0001>

<llo_original>
// kernel: tpu_custom_call.1
$region0: #{tpu_custom_call.1}
  #allocation0 [shape = 'u32[]', space=smem, size = 0x4, offset = 0x4, fixed_abs, tag = 'smem constant byte address 0x4 - core index']
  #allocation1 [shape = 'u32[144,128]{1,0:T(1,128)}', space=vmem, size = 0x12000, scoped, tag = 'internal scratch']
  #allocation2 [shape = 'f32[1,64]{1,0:T(1,128)}', space=vmem, size = 0x200, scoped, tag = 'scratch operand']
  %s0 = inlined_call_operand.vmem [shape: f32[20,16], index: 0, kind: input, shape index: {}]
  %s1 = inlined_call_operand.vmem [shape: f32[32,64], index: 1, kind: input, shape index: {}]
  %s2 = inlined_call_operand.hbm [shape: f32[64,144], index: 2, kind: input, shape index: {}]
  %s3 = inlined_call_operand.vmem [shape: f32[4,128], index: 3, kind: input, shape index: {}]
  %s4 = inlined_call_operand.hbm [shape: f32[1,128], index: 4, kind: output, shape index: {}]
  %s5 = sld [smem:[#allocation0]]
  $region61: #{tpu_custom_call.1} parent=0
    _
  %s7 = ssub.s32 1, %s5
  %s8 = scalar_select 0, %s7, %s5
  $region1: #{tpu_custom_call.1} parent=0
    #allocation3 [shape = 'u8[65536]{0}', space=vmem, size = 0x10000, scoped, tag = 'input window, operand 2, single buffered']
    #allocation4 [shape = 's32[2]{0}', space=sflag, size = 0x8, scoped, tag = 'scoped memory for tpu_custom_call.1']
    #allocation5 [shape = 's32[2]{0}', space=sflag, size = 0x8, scoped, tag = 'scoped memory for tpu_custom_call.1']
    #allocation6 [shape = 'u8[512]{0}', space=vmem, size = 0x400, scoped, tag = 'output window, operand 0, single buffered']
    %9 = vsyncpa [#allocation4], 0
    %10 = vsyncpa [#allocation5], 0
    loop: start=0, step=1, limit=5
    $region2: #{tpu_custom_call.1} parent=1 // loop_pre_header
      _
    $region3: #{tpu_custom_call.1} parent=1 // loop_header
      %s12 = sphi 0, %s16
      %p13 = scmp.ge.s32.totalorder %s12, 5
      %s22 = sphi 0, %s24
      %s25 = sphi 0, %s22
      %s26 = sphi 0, %s25
      %s42 = sphi 0, %s26
      %s46 = sphi 0, %s46
      %s48 = sphi 0, %s46
      %s49 = sphi 0, %s48
      %s63 = sphi 0, %s49
      %s67 = sphi 0, %s67
      %s69 = sphi 0, %s67
      %s70 = sphi 0, %s69
      %s84 = sphi 0, %s70
      %s88 = sphi 0, %s88
      %s90 = sphi 0, %s88
      %s91 = sphi 0, %s90
      %s105 = sphi 0, %s91
      %s109 = sphi 0, %s109
      %s111 = sphi 0, %s109
      %s112 = sphi 0, %s111
      %s126 = sphi 0, %s112
    $region4: #{tpu_custom_call.1} parent=1 // loop_header_branch
      %15 = sbr.rel (%p13) target = $region8
    $region5: #{tpu_custom_call.1} parent=1 // loop_body
      %s17 = ssub.s32 %s12, 1
      %s18 = ssub.s32 %s12, 2
      %s19 = sadd.s32 %s12, 1
      %s20 = ssub.s32 %s12, %s19
      %p21 = scmp.eq.s32.totalorder %s20, 0
      %s23 = sadd.s32 %s22, 1
      %s24 = scalar_select %p21, %s22, %s23
      %p27 = pneg %p21
      %p28 = scmp.eq.s32.totalorder %s12, 2
      %p29 = por %p27, %p28
      %p30 = scmp.ne.s32.totalorder %s22, %s25
      %p31 = scmp.eq.s32.totalorder %s12, 0
      %p32 = por %p30, %p31
      %p33 = scmp.ne.s32.totalorder %s22, %s25
      %p34 = scmp.eq.s32.totalorder %s17, 2
      %p35 = por %p33, %p34
      %p36 = scmp.ne.s32.totalorder %s25, %s26
      %p37 = scmp.eq.s32.totalorder %s17, 0
      %p38 = por %p36, %p37
      %p39 = scmp.ne.s32.totalorder %s25, %s26
      %p40 = scmp.eq.s32.totalorder %s18, 2
      %p41 = por %p39, %p40
      %p43 = scmp.ne.s32.totalorder %s26, %s42
      %p44 = scmp.eq.s32.totalorder %s18, 0
      %p45 = por %p43, %p44
      %s47 = sadd.s32 %s46, 1
      %p50 = scmp.eq.s32.totalorder %s12, 2
      %p51 = scmp.ne.s32.totalorder %s46, %s48
      %p52 = scmp.eq.s32.totalorder %s12, 0
      %p53 = por %p51, %p52
      %p54 = scmp.ne.s32.totalorder %s46, %s48
      %p55 = scmp.eq.s32.totalorder %s17, 2
      %p56 = por %p54, %p55
      %p57 = scmp.ne.s32.totalorder %s48, %s49
      %p58 = scmp.eq.s32.totalorder %s17, 0
      %p59 = por %p57, %p58
      %p60 = scmp.ne.s32.totalorder %s48, %s49
      %p61 = scmp.eq.s32.totalorder %s18, 2
      %p62 = por %p60, %p61
      %p64 = scmp.ne.s32.totalorder %s49, %s63
      %p65 = scmp.eq.s32.totalorder %s18, 0
      %p66 = por %p64, %p65
      %s68 = sadd.s32 %s67, 1
      %p71 = scmp.eq.s32.totalorder %s12, 2
      %p72 = scmp.ne.s32.totalorder %s67, %s69
      %p73 = scmp.eq.s32.totalorder %s12, 0
      %p74 = por %p72, %p73
      %p75 = scmp.ne.s32.totalorder %s67, %s69
      %p76 = scmp.eq.s32.totalorder %s17, 2
      %p77 = por %p75, %p76
      %p78 = scmp.ne.s32.totalorder %s69, %s70
      %p79 = scmp.eq.s32.totalorder %s17, 0
      %p80 = por %p78, %p79
      %p81 = scmp.ne.s32.totalorder %s69, %s70
      %p82 = scmp.eq.s32.totalorder %s18, 2
      %p83 = por %p81, %p82
      %p85 = scmp.ne.s32.totalorder %s70, %s84
      %p86 = scmp.eq.s32.totalorder %s18, 0
      %p87 = por %p85, %p86
      %s89 = sadd.s32 %s88, 1
      %p92 = scmp.eq.s32.totalorder %s12, 2
      %p93 = scmp.ne.s32.totalorder %s88, %s90
      %p94 = scmp.eq.s32.totalorder %s12, 0
      %p95 = por %p93, %p94
      %p96 = scmp.ne.s32.totalorder %s88, %s90
      %p97 = scmp.eq.s32.totalorder %s17, 2
      %p98 = por %p96, %p97
      %p99 = scmp.ne.s32.totalorder %s90, %s91
      %p100 = scmp.eq.s32.totalorder %s17, 0
      %p101 = por %p99, %p100
      %p102 = scmp.ne.s32.totalorder %s90, %s91
      %p103 = scmp.eq.s32.totalorder %s18, 2
      %p104 = por %p102, %p103
      %p106 = scmp.ne.s32.totalorder %s91, %s105
      %p107 = scmp.eq.s32.totalorder %s18, 0
      %p108 = por %p106, %p107
      %s110 = sadd.s32 %s109, 1
      %p113 = scmp.eq.s32.totalorder %s12, 2
      %p114 = scmp.ne.s32.totalorder %s109, %s111
      %p115 = scmp.eq.s32.totalorder %s12, 0
      %p116 = por %p114, %p115
      %p117 = scmp.ne.s32.totalorder %s109, %s111
      %p118 = scmp.eq.s32.totalorder %s17, 2
      %p119 = por %p117, %p118
      %p120 = scmp.ne.s32.totalorder %s111, %s112
      %p121 = scmp.eq.s32.totalorder %s17, 0
      %p122 = por %p120, %p121
      %p123 = scmp.ne.s32.totalorder %s111, %s112
      %p124 = scmp.eq.s32.totalorder %s18, 2
      %p125 = por %p123, %p124
      %p127 = scmp.ne.s32.totalorder %s112, %s126
      %p128 = scmp.eq.s32.totalorder %s18, 0
      %p129 = por %p127, %p128
      %p130 = scmp.le.s32.totalorder 1, %s12
      %p131 = scmp.lt.s32.totalorder %s12, 4
      %p132 = pnand %p130, %p131
      %p133 = pneg %p132
      // Predicated region
      $region9: #{tpu_custom_call.1} parent=5 // pred_check
        _
      $region10: #{tpu_custom_call.1} parent=5 // pred_check_branch
        %135 = sbr.rel (%p132) target = $region12
      $region11: #{tpu_custom_call.1} parent=5 // pred_region
        %s136 = ssub.s32 %s12, 1
        // Predicated region
        $region13: #{tpu_custom_call.1} parent=11 // pred_check
          %p137 = pneg %p59
        $region14: #{tpu_custom_call.1} parent=11 // pred_check_branch
          %139 = sbr.rel (%p137) target = $region16
        $region15: #{tpu_custom_call.1} parent=11 // pred_region
          _
        $region16: #{tpu_custom_call.1} parent=11 // pred_fallthru
          _
        // Predicated region
        $region17: #{tpu_custom_call.1} parent=11 // pred_check
          %p140 = pneg %p80
        $region18: #{tpu_custom_call.1} parent=11 // pred_check_branch
          %142 = sbr.rel (%p140) target = $region20
        $region19: #{tpu_custom_call.1} parent=11 // pred_region
          %s144 = ssub.s32 2048, 2048
          %145 = vsyncadd [#allocation4], %s144
          %s146 = sshll.u32 [#allocation3], 4
          %s147 = int_to_ptr.vmem [resolvable:$true] %s146
          %152 = dma.hbm_to_vmem [thread:$0]  %s2, 2048, %s147, [#allocation4], 256, 256, 16
        $region20: #{tpu_custom_call.1} parent=11 // pred_fallthru
          _
        // Predicated region
        $region21: #{tpu_custom_call.1} parent=11 // pred_check
          %p153 = pneg %p101
        $region22: #{tpu_custom_call.1} parent=11 // pred_check_branch
          %155 = sbr.rel (%p153) target = $region24
        $region23: #{tpu_custom_call.1} parent=11 // pred_region
          _
        $region24: #{tpu_custom_call.1} parent=11 // pred_fallthru
          _
      $region12: #{tpu_custom_call.1} parent=5 // pred_fallthru
        _
      %p156 = scmp.lt.s32.totalorder %s12, 3
      // Predicated region
      $region25: #{tpu_custom_call.1} parent=5 // pred_check
        %p157 = pneg %p156
      $region26: #{tpu_custom_call.1} parent=5 // pred_check_branch
        %159 = sbr.rel (%p157) target = $region28
      $region27: #{tpu_custom_call.1} parent=5 // pred_region
        // Predicated region
        $region29: #{tpu_custom_call.1} parent=27 // pred_check
          %p160 = pneg %p32
        $region30: #{tpu_custom_call.1} parent=27 // pred_check_branch
          %162 = sbr.rel (%p160) target = $region32
        $region31: #{tpu_custom_call.1} parent=27 // pred_region
          %p163 = scmp.lt.s32.totalorder %s12, 2
          %s164 = scalar_select %p163, %s12, 2
          %s165 = smul.addr %s164, 8
          %s166 = scalar_lea.vmem %s0, %s165
        $region32: #{tpu_custom_call.1} parent=27 // pred_fallthru
          _
      $region28: #{tpu_custom_call.1} parent=5 // pred_fallthru
        _
      %p167 = scmp.le.s32.totalorder 1, %s12
      %p168 = scmp.lt.s32.totalorder %s12, 4
      %p169 = pnand %p167, %p168
      %p170 = pneg %p169
      // Predicated region
      $region33: #{tpu_custom_call.1} parent=5 // pred_check
        _
      $region34: #{tpu_custom_call.1} parent=5 // pred_check_branch
        %172 = sbr.rel (%p169) target = $region36
      $region35: #{tpu_custom_call.1} parent=5 // pred_region
        %s173 = ssub.s32 %s12, 1
        // Predicated region
        $region37: #{tpu_custom_call.1} parent=35 // pred_check
          %p174 = pneg %p80
        $region38: #{tpu_custom_call.1} parent=35 // pred_check_branch
          %176 = sbr.rel (%p174) target = $region40
        $region39: #{tpu_custom_call.1} parent=35 // pred_region
          %177 = dma.done [#allocation4], 2048
        $region40: #{tpu_custom_call.1} parent=35 // pred_fallthru
          _
        %p178 = scmp.lt.s32.totalorder %s17, 2
        %s179 = scalar_select %p178, %s17, 2
        %s180 = smul.addr %s179, 8
        %s181 = scalar_lea.vmem %s0, %s180
        %p182 = pneg %p38
        %p183 = pneg %p35
        %p184 = pneg %p59
        %p185 = pneg %p56
        %p186 = pneg %p80
        %p187 = pneg %p77
        %p188 = pneg %p101
        %p189 = pneg %p98
        %p190 = pneg %p122
        %p191 = pneg %p119
        %p192 = scmp.lt.s32.totalorder %s17, 2
        %s193 = scalar_select %p192, %s17, 2
        %s194 = smul.addr %s193, 8
        %s195 = scalar_lea.vmem %s0, %s194
        %p196 = scmp.eq.s32.totalorder %s17, 0
        // Predicated region
        $region41: #{tpu_custom_call.1} parent=35 // pred_check
          %p197 = pneg %p196
        $region42: #{tpu_custom_call.1} parent=35 // pred_check_branch
          %199 = sbr.rel (%p197) target = $region44
        $region43: #{tpu_custom_call.1} parent=35 // pred_region
          %vm200 = vcmask 516096
          %201 = vst.msk [vmem:[#allocation2] sm:$0x1] %vm200, 0.0
        $region44: #{tpu_custom_call.1} parent=35 // pred_fallthru
          _
        %v202 = vld [vmem:[%s195] sm:$0xff]
        %v203 = vld [vmem:[%s1] sm:$0xff]
        %v204 = vld [vmem:[%s1 + $0x8] sm:$0xff]
        %v205 = vld [vmem:[%s3] sm:$0x1]
        %v206 = vlaneseq
        %v207 = vshrl.u32 %v206, 7
        %v208 = vsub.s32 0, %v207
        %v209 = vrot.slane %v205, %v208
        %vm210 = vcmask 130048
        %v212 = vsel %vm210, %v202, 0
        %214 = vmatprep.subr.mxu0 0.0
        %215 = vmatpush1.msra.mxu0 0.0
        %216 = vmatprep.subr.mxu0 0.0
        %217 = vmatpush1.msra.mxu0 0.0
        %218 = vmatprep.subr.mxu0 0.0
        %219 = vmatpush1.msra.mxu0 0.0
        %220 = vmatprep.subr.mxu0 0.0
        %221 = vmatpush1.msra.mxu0 0.0
        %222 = vmatprep.subr.mxu0 0.0
        %223 = vmatpush1.msra.mxu0 0.0
        %224 = vmatprep.subr.mxu0 0.0
        %225 = vmatpush1.msra.mxu0 0.0
        %226 = vmatprep.subr.mxu0 0.0
        %227 = vmatpush1.msra.mxu0 0.0
        %228 = vmatprep.subr.mxu0 0.0
        %229 = vmatpush1.msra.mxu0 0.0
        %230 = vmatprep.subr.mxu0 0.0
        %231 = vmatpush1.msra.mxu0 0.0
        %232 = vmatprep.subr.mxu0 0.0
        %233 = vmatpush1.msra.mxu0 0.0
        %234 = vmatprep.subr.mxu0 0.0
        %235 = vmatpush1.msra.mxu0 0.0
        %236 = vmatprep.subr.mxu0 0.0
        %237 = vmatpush1.msra.mxu0 0.0
        %238 = vmatprep.subr.mxu0 0.0
        %239 = vmatpush1.msra.mxu0 0.0
        %240 = vmatprep.subr.mxu0 0.0
        %241 = vmatpush1.msra.mxu0 0.0
        %242 = vmatprep.subr.mxu0 0.0
        %243 = vmatpush1.msra.mxu0 %v204
        %244 = vmatprep.subr.mxu0 0.0
        %245 = vmatpush1.msra.mxu0 %v203
        %246 = vmatprep.subr.mxu0 0.0
        %247 = vmatpush2.msra.mxu0 0.0
        %248 = vmatprep.subr.mxu0 0.0
        %249 = vmatpush2.msra.mxu0 0.0
        %250 = vmatprep.subr.mxu0 0.0
        %251 = vmatpush2.msra.mxu0 0.0
        %252 = vmatprep.subr.mxu0 0.0
        %253 = vmatpush2.msra.mxu0 0.0
        %254 = vmatprep.subr.mxu0 0.0
        %255 = vmatpush2.msra.mxu0 0.0
        %256 = vmatprep.subr.mxu0 0.0
        %257 = vmatpush2.msra.mxu0 0.0
        %258 = vmatprep.subr.mxu0 0.0
        %259 = vmatpush2.msra.mxu0 0.0
        %260 = vmatprep.subr.mxu0 0.0
        %261 = vmatpush2.msra.mxu0 0.0
        %262 = vmatprep.subr.mxu0 0.0
        %263 = vmatpush2.msra.mxu0 0.0
        %264 = vmatprep.subr.mxu0 0.0
        %265 = vmatpush2.msra.mxu0 0.0
        %266 = vmatprep.subr.mxu0 0.0
        %267 = vmatpush2.msra.mxu0 0.0
        %268 = vmatprep.subr.mxu0 0.0
        %269 = vmatpush2.msra.mxu0 0.0
        %270 = vmatprep.subr.mxu0 0.0
        %271 = vmatpush2.msra.mxu0 0.0
        %272 = vmatprep.subr.mxu0 0.0
        %273 = vmatpush2.msra.mxu0 0.0
        %274 = vmatprep.subr.mxu0 0.0
        %275 = vmatpush2.msra.mxu0 0.0
        %276 = vmatprep.subr.mxu0 0.0
        %277 = vmatpush2.msra.mxu0 0.0
        %278 = vmatprep.mubr.f32.mxu0 0.0
        %279 = vmatmul.mubr.f32.gmra.mxu0 %v212
        %v280 = vpop.f32.mrf.mxu0
        %v281 = vadd.f32 %v209, %v280
        %v282 = vpop.f32.mrf.mxu0
        %283 = vdwg.mxu0
        %v284 = vmax.f32 %v281, 0.0
        %v285 = vlaneseq
        %v286 = vshrl.u32 %v285, 7
        %s287 = smul.u32 %s17, 8
        %v288 = vstv %s287
        %v289 = vadd.s32 %v286, %v288
        %vm290 = vcmp.lt.s32.totalorder %v289, 20
        %v291 = vsel %vm290, 1, 0
        %vm292 = vcmp.eq.s32.totalorder %v291, 1
        %v293 = vsel %vm292, %v284, 0.0
        %v294 = vld [vmem:[#allocation2] sm:$0x1]
        %vm295 = vcmask 523264
        %v296 = vsel %vm295, %v293, 0.0
        %v297 = vrot.slane %v296, 4
        %v298 = vadd.f32 %v296, %v297
        %v299 = vrot.slane %v298, 2
        %v300 = vadd.f32 %v298, %v299
        %v301 = vrot.slane %v300, 1
        %v302 = vadd.f32 %v300, %v301
        %v303 = vadd.f32 %v294, %v302
        %vm304 = vcmask 516096
        %305 = vst.msk [vmem:[#allocation2] sm:$0x1] %vm304, %v303
        %p306 = scmp.eq.s32.totalorder %s17, 2
        // Predicated region
        $region45: #{tpu_custom_call.1} parent=35 // pred_check
          %p307 = pneg %p306
        $region46: #{tpu_custom_call.1} parent=35 // pred_check_branch
          %309 = sbr.rel (%p307) target = $region48
        $region47: #{tpu_custom_call.1} parent=35 // pred_region
          %v310 = vld [vmem:[#allocation2] sm:$0x1]
          %v311 = vld [vmem:[#allocation3 + $0x8] sm:$0xff]
          %v312 = vld [vmem:[#allocation3 + $0x18] sm:$0xff]
          %v313 = vld [vmem:[#allocation3 + $0x28] sm:$0xff]
          %v314 = vld [vmem:[#allocation3 + $0x38] sm:$0xff]
          %v315 = vld [vmem:[#allocation3 + $0x48] sm:$0xff]
          %v316 = vld [vmem:[#allocation3 + $0x58] sm:$0xff]
          %v317 = vld [vmem:[#allocation3 + $0x68] sm:$0xff]
          %v318 = vld [vmem:[#allocation3 + $0x78] sm:$0xff]
          %v319 = vld [vmem:[%s3 + $0x1] sm:$0x1]
          %v320 = vmul.f32 %v319, 20.0
          %v322 = vsel %vm295, %v310, 0
          %324 = vmatprep.subr.mxu0 0.0
          %325 = vmatpush1.msra.mxu0 0.0
          %326 = vmatprep.subr.mxu0 0.0
          %327 = vmatpush1.msra.mxu0 0.0
          %328 = vmatprep.subr.mxu0 0.0
          %329 = vmatpush1.msra.mxu0 0.0
          %330 = vmatprep.subr.mxu0 0.0
          %331 = vmatpush1.msra.mxu0 0.0
          %332 = vmatprep.subr.mxu0 0.0
          %333 = vmatpush1.msra.mxu0 0.0
          %334 = vmatprep.subr.mxu0 0.0
          %335 = vmatpush1.msra.mxu0 0.0
          %336 = vmatprep.subr.mxu0 0.0
          %337 = vmatpush1.msra.mxu0 0.0
          %338 = vmatprep.subr.mxu0 0.0
          %339 = vmatpush1.msra.mxu0 0.0
          %340 = vmatprep.subr.mxu0 0.0
          %341 = vmatpush1.msra.mxu0 %v318
          %342 = vmatprep.subr.mxu0 0.0
          %343 = vmatpush1.msra.mxu0 %v317
          %344 = vmatprep.subr.mxu0 0.0
          %345 = vmatpush1.msra.mxu0 %v316
          %346 = vmatprep.subr.mxu0 0.0
          %347 = vmatpush1.msra.mxu0 %v315
          %348 = vmatprep.subr.mxu0 0.0
          %349 = vmatpush1.msra.mxu0 %v314
          %350 = vmatprep.subr.mxu0 0.0
          %351 = vmatpush1.msra.mxu0 %v313
          %352 = vmatprep.subr.mxu0 0.0
          %353 = vmatpush1.msra.mxu0 %v312
          %354 = vmatprep.subr.mxu0 0.0
          %355 = vmatpush1.msra.mxu0 %v311
          %356 = vmatprep.subr.mxu0 0.0
          %357 = vmatpush2.msra.mxu0 0.0
          %358 = vmatprep.subr.mxu0 0.0
          %359 = vmatpush2.msra.mxu0 0.0
          %360 = vmatprep.subr.mxu0 0.0
          %361 = vmatpush2.msra.mxu0 0.0
          %362 = vmatprep.subr.mxu0 0.0
          %363 = vmatpush2.msra.mxu0 0.0
          %364 = vmatprep.subr.mxu0 0.0
          %365 = vmatpush2.msra.mxu0 0.0
          %366 = vmatprep.subr.mxu0 0.0
          %367 = vmatpush2.msra.mxu0 0.0
          %368 = vmatprep.subr.mxu0 0.0
          %369 = vmatpush2.msra.mxu0 0.0
          %370 = vmatprep.subr.mxu0 0.0
          %371 = vmatpush2.msra.mxu0 0.0
          %372 = vmatprep.subr.mxu0 0.0
          %373 = vmatpush2.msra.mxu0 0.0
          %374 = vmatprep.subr.mxu0 0.0
          %375 = vmatpush2.msra.mxu0 0.0
          %376 = vmatprep.subr.mxu0 0.0
          %377 = vmatpush2.msra.mxu0 0.0
          %378 = vmatprep.subr.mxu0 0.0
          %379 = vmatpush2.msra.mxu0 0.0
          %380 = vmatprep.subr.mxu0 0.0
          %381 = vmatpush2.msra.mxu0 0.0
          %382 = vmatprep.subr.mxu0 0.0
          %383 = vmatpush2.msra.mxu0 0.0
          %384 = vmatprep.subr.mxu0 0.0
          %385 = vmatpush2.msra.mxu0 0.0
          %386 = vmatprep.subr.mxu0 0.0
          %387 = vmatpush2.msra.mxu0 0.0
          %388 = vmatprep.mubr.f32.mxu0 0.0
          %389 = vmatmul.mubr.f32.gmra.mxu0 %v322
          %v390 = vpop.f32.mrf.mxu0
          %v391 = vadd.f32 %v320, %v390
          %v392 = vpop.f32.mrf.mxu0
          %393 = vdwg.mxu0
          %v394 = vld [vmem:[%s1 + $0x10] sm:$0xff]
          %v395 = vld [vmem:[%s1 + $0x18] sm:$0xff]
          %v396 = vld [vmem:[%s3 + $0x2] sm:$0x1]
          %v398 = vsel %vm210, %v391, 0
          %400 = vmatprep.subr.mxu0 0.0
          %401 = vmatpush1.msra.mxu0 0.0
          %402 = vmatprep.subr.mxu0 0.0
          %403 = vmatpush1.msra.mxu0 0.0
          %404 = vmatprep.subr.mxu0 0.0
          %405 = vmatpush1.msra.mxu0 0.0
          %406 = vmatprep.subr.mxu0 0.0
          %407 = vmatpush1.msra.mxu0 0.0
          %408 = vmatprep.subr.mxu0 0.0
          %409 = vmatpush1.msra.mxu0 0.0
          %410 = vmatprep.subr.mxu0 0.0
          %411 = vmatpush1.msra.mxu0 0.0
          %412 = vmatprep.subr.mxu0 0.0
          %413 = vmatpush1.msra.mxu0 0.0
          %414 = vmatprep.subr.mxu0 0.0
          %415 = vmatpush1.msra.mxu0 0.0
          %416 = vmatprep.subr.mxu0 0.0
          %417 = vmatpush1.msra.mxu0 0.0
          %418 = vmatprep.subr.mxu0 0.0
          %419 = vmatpush1.msra.mxu0 0.0
          %420 = vmatprep.subr.mxu0 0.0
          %421 = vmatpush1.msra.mxu0 0.0
          %422 = vmatprep.subr.mxu0 0.0
          %423 = vmatpush1.msra.mxu0 0.0
          %424 = vmatprep.subr.mxu0 0.0
          %425 = vmatpush1.msra.mxu0 0.0
          %426 = vmatprep.subr.mxu0 0.0
          %427 = vmatpush1.msra.mxu0 0.0
          %428 = vmatprep.subr.mxu0 0.0
          %429 = vmatpush1.msra.mxu0 %v395
          %430 = vmatprep.subr.mxu0 0.0
          %431 = vmatpush1.msra.mxu0 %v394
          %432 = vmatprep.subr.mxu0 0.0
          %433 = vmatpush2.msra.mxu0 0.0
          %434 = vmatprep.subr.mxu0 0.0
          %435 = vmatpush2.msra.mxu0 0.0
          %436 = vmatprep.subr.mxu0 0.0
          %437 = vmatpush2.msra.mxu0 0.0
          %438 = vmatprep.subr.mxu0 0.0
          %439 = vmatpush2.msra.mxu0 0.0
          %440 = vmatprep.subr.mxu0 0.0
          %441 = vmatpush2.msra.mxu0 0.0
          %442 = vmatprep.subr.mxu0 0.0
          %443 = vmatpush2.msra.mxu0 0.0
          %444 = vmatprep.subr.mxu0 0.0
          %445 = vmatpush2.msra.mxu0 0.0
          %446 = vmatprep.subr.mxu0 0.0
          %447 = vmatpush2.msra.mxu0 0.0
          %448 = vmatprep.subr.mxu0 0.0
          %449 = vmatpush2.msra.mxu0 0.0
          %450 = vmatprep.subr.mxu0 0.0
          %451 = vmatpush2.msra.mxu0 0.0
          %452 = vmatprep.subr.mxu0 0.0
          %453 = vmatpush2.msra.mxu0 0.0
          %454 = vmatprep.subr.mxu0 0.0
          %455 = vmatpush2.msra.mxu0 0.0
          %456 = vmatprep.subr.mxu0 0.0
          %457 = vmatpush2.msra.mxu0 0.0
          %458 = vmatprep.subr.mxu0 0.0
          %459 = vmatpush2.msra.mxu0 0.0
          %460 = vmatprep.subr.mxu0 0.0
          %461 = vmatpush2.msra.mxu0 0.0
          %462 = vmatprep.subr.mxu0 0.0
          %463 = vmatpush2.msra.mxu0 0.0
          %464 = vmatprep.mubr.f32.mxu0 0.0
          %465 = vmatmul.mubr.f32.gmra.mxu0 %v398
          %v466 = vpop.f32.mrf.mxu0
          %v467 = vadd.f32 %v396, %v466
          %v468 = vpop.f32.mrf.mxu0
          %469 = vdwg.mxu0
          %v470 = vmax.f32 %v467, 0.0
          %v471 = vld [vmem:[#allocation3] sm:$0xff]
          %v472 = vld [vmem:[#allocation3 + $0x10] sm:$0xff]
          %v473 = vld [vmem:[#allocation3 + $0x20] sm:$0xff]
          %v474 = vld [vmem:[#allocation3 + $0x30] sm:$0xff]
          %v475 = vld [vmem:[#allocation3 + $0x40] sm:$0xff]
          %v476 = vld [vmem:[#allocation3 + $0x50] sm:$0xff]
          %v477 = vld [vmem:[#allocation3 + $0x60] sm:$0xff]
          %v478 = vld [vmem:[#allocation3 + $0x70] sm:$0xff]
          %v479 = vld [vmem:[%s3 + $0x3] sm:$0x1]
          %v481 = vsel %vm295, %v470, 0
          %483 = vmatprep.subr.mxu0 0.0
          %484 = vmatpush1.msra.mxu0 0.0
          %485 = vmatprep.subr.mxu0 0.0
          %486 = vmatpush1.msra.mxu0 0.0
          %487 = vmatprep.subr.mxu0 0.0
          %488 = vmatpush1.msra.mxu0 0.0
          %489 = vmatprep.subr.mxu0 0.0
          %490 = vmatpush1.msra.mxu0 0.0
          %491 = vmatprep.subr.mxu0 0.0
          %492 = vmatpush1.msra.mxu0 0.0
          %493 = vmatprep.subr.mxu0 0.0
          %494 = vmatpush1.msra.mxu0 0.0
          %495 = vmatprep.subr.mxu0 0.0
          %496 = vmatpush1.msra.mxu0 0.0
          %497 = vmatprep.subr.mxu0 0.0
          %498 = vmatpush1.msra.mxu0 0.0
          %499 = vmatprep.subr.mxu0 0.0
          %500 = vmatpush1.msra.mxu0 %v478
          %501 = vmatprep.subr.mxu0 0.0
          %502 = vmatpush1.msra.mxu0 %v477
          %503 = vmatprep.subr.mxu0 0.0
          %504 = vmatpush1.msra.mxu0 %v476
          %505 = vmatprep.subr.mxu0 0.0
          %506 = vmatpush1.msra.mxu0 %v475
          %507 = vmatprep.subr.mxu0 0.0
          %508 = vmatpush1.msra.mxu0 %v474
          %509 = vmatprep.subr.mxu0 0.0
          %510 = vmatpush1.msra.mxu0 %v473
          %511 = vmatprep.subr.mxu0 0.0
          %512 = vmatpush1.msra.mxu0 %v472
          %513 = vmatprep.subr.mxu0 0.0
          %514 = vmatpush1.msra.mxu0 %v471
          %515 = vmatprep.subr.mxu0 0.0
          %516 = vmatpush2.msra.mxu0 0.0
          %517 = vmatprep.subr.mxu0 0.0
          %518 = vmatpush2.msra.mxu0 0.0
          %519 = vmatprep.subr.mxu0 0.0
          %520 = vmatpush2.msra.mxu0 0.0
          %521 = vmatprep.subr.mxu0 0.0
          %522 = vmatpush2.msra.mxu0 0.0
          %523 = vmatprep.subr.mxu0 0.0
          %524 = vmatpush2.msra.mxu0 0.0
          %525 = vmatprep.subr.mxu0 0.0
          %526 = vmatpush2.msra.mxu0 0.0
          %527 = vmatprep.subr.mxu0 0.0
          %528 = vmatpush2.msra.mxu0 0.0
          %529 = vmatprep.subr.mxu0 0.0
          %530 = vmatpush2.msra.mxu0 0.0
          %531 = vmatprep.subr.mxu0 0.0
          %532 = vmatpush2.msra.mxu0 0.0
          %533 = vmatprep.subr.mxu0 0.0
          %534 = vmatpush2.msra.mxu0 0.0
          %535 = vmatprep.subr.mxu0 0.0
          %536 = vmatpush2.msra.mxu0 0.0
          %537 = vmatprep.subr.mxu0 0.0
          %538 = vmatpush2.msra.mxu0 0.0
          %539 = vmatprep.subr.mxu0 0.0
          %540 = vmatpush2.msra.mxu0 0.0
          %541 = vmatprep.subr.mxu0 0.0
          %542 = vmatpush2.msra.mxu0 0.0
          %543 = vmatprep.subr.mxu0 0.0
          %544 = vmatpush2.msra.mxu0 0.0
          %545 = vmatprep.subr.mxu0 0.0
          %546 = vmatpush2.msra.mxu0 0.0
          %547 = vmatprep.mubr.f32.mxu0 0.0
          %548 = vmatmul.mubr.f32.gmra.mxu0 %v481
          %v549 = vpop.f32.mrf.mxu0
          %v550 = vadd.f32 %v479, %v549
          %v551 = vpop.f32.mrf.mxu0
          %552 = vdwg.mxu0
          %553 = vst [vmem:[#allocation6] sm:$0x1] %v550
        $region48: #{tpu_custom_call.1} parent=35 // pred_fallthru
          _
        // Predicated region
        $region49: #{tpu_custom_call.1} parent=35 // pred_check
          %p554 = pneg %p119
        $region50: #{tpu_custom_call.1} parent=35 // pred_check_branch
          %556 = sbr.rel (%p554) target = $region52
        $region51: #{tpu_custom_call.1} parent=35 // pred_region
          %s558 = ssub.s32 16, 16
          %559 = vsyncadd [#allocation5], %s558
          %s561 = sshll.u32 [#allocation6], 4
          %s562 = int_to_ptr.vmem [resolvable:$true] %s561
          %564 = dma.vmem_to_hbm [thread:$0]  %s562, 16, %s4, [#allocation5]
        $region52: #{tpu_custom_call.1} parent=35 // pred_fallthru
          _
        // Predicated region
        $region53: #{tpu_custom_call.1} parent=35 // pred_check
          %p565 = pneg %p119
        $region54: #{tpu_custom_call.1} parent=35 // pred_check_branch
          %567 = sbr.rel (%p565) target = $region56
        $region55: #{tpu_custom_call.1} parent=35 // pred_region
          %568 = dma.done [#allocation5], 16
        $region56: #{tpu_custom_call.1} parent=35 // pred_fallthru
          _
      $region36: #{tpu_custom_call.1} parent=5 // pred_fallthru
        _
      %p569 = scmp.le.s32.totalorder 2, %s12
      // Predicated region
      $region57: #{tpu_custom_call.1} parent=5 // pred_check
        %p570 = pneg %p569
      $region58: #{tpu_custom_call.1} parent=5 // pred_check_branch
        %572 = sbr.rel (%p570) target = $region60
      $region59: #{tpu_custom_call.1} parent=5 // pred_region
        %s573 = ssub.s32 %s12, 2
      $region60: #{tpu_custom_call.1} parent=5 // pred_fallthru
        _
    $region6: #{tpu_custom_call.1} parent=1 // loop_footer
      %s16 = sadd.s32 1, %s12
    $region7: #{tpu_custom_call.1} parent=1 // loop_footer_branch
      %11 = sbr.rel target = $region3
    $region8: #{tpu_custom_call.1} parent=1 // loop_exit
      _
    %574 = vsyncpa [#allocation4], 1
    %s575 = scalar_lea.sflag [#allocation4], 1
    %576 = vsyncpa %s575, 1
    %577 = vsyncpa [#allocation5], 1
    %s578 = scalar_lea.sflag [#allocation5], 1
    %579 = vsyncpa %s578, 1

</llo_original>
